<compile_context>
chip_gen: v7x
topology: tpu7x:2x2x1
jax: 0.10.0
libtpu: 0.0.40
codegen_flags: <defaults>
</compile_context>

<pallas_src>
import functools

import jax
import jax.numpy as jnp
import numpy as np
from jax import lax
from jax.experimental import pallas as pl
from jax.experimental.pallas import tpu as pltpu

EPS = 1e-5
_LANE = 128
_TARGET_COLS = 16384      # output columns handled per grid step


def _round_up(a, b):
    return (a + b - 1) // b * b


def _cdiv(a, b):
    return -(-a // b)


def _stats_kernel(w_ref, p_ref, sum_ref, ssq_ref, *, c_out, bn, n_chunks):
    """Per-block partial BN statistics of y = w @ p, accumulated lane-wise.

    w_ref   : (C_out, CK_pad)       bf16  weight^T (resident across the grid)
    p_ref   : (bn, CK_pad, tile_L)  bf16  patch tile for `bn` batch rows
    sum_ref : (1, 1, C_out, 128)    f32   lane-wise partial per-channel sum
    ssq_ref : (1, 1, C_out, 128)    f32   lane-wise partial per-channel sum of squares

    Zero-padded patch columns / batch rows contribute exactly 0 because no bias is
    added before the statistics.
    """
    w = w_ref[...]
    s = jnp.zeros((c_out, _LANE), jnp.float32)
    q = jnp.zeros((c_out, _LANE), jnp.float32)
    for i in range(bn):
        y = jnp.dot(w, p_ref[i], preferred_element_type=jnp.float32)   # (C_out, tile_L)
        for c in range(n_chunks):                                       # vreg-aligned
            chunk = y[:, c * _LANE:(c + 1) * _LANE]
            s = s + chunk
            q = q + chunk * chunk
    sum_ref[0, 0] = s
    ssq_ref[0, 0] = q


def _normalize_kernel(w_ref, scale_ref, shift_ref, p_ref, o_ref, *, bn):
    """y = w @ p, then y * scale + shift, written in the final (N, C_out, L) layout.

    w_ref     : (C_out, CK_pad)       bf16
    scale_ref : (C_out, 1)            f32   gamma / sqrt(var + eps)
    shift_ref : (C_out, 1)            f32   beta - mean * scale
    p_ref     : (bn, CK_pad, tile_L)  bf16
    o_ref     : (bn, C_out, tile_L)   f32   lane-dense on the L_out axis
    """
    w = w_ref[...]
    scale = scale_ref[...]
    shift = shift_ref[...]
    for i in range(bn):
        y = jnp.dot(w, p_ref[i], preferred_element_type=jnp.float32)
        o_ref[i] = (y * scale + shift).astype(o_ref.dtype)


def _build_patches(x, K, stride, padding, dilation, L_out, CK_pad, L_pad, N_pad):
    """im2col for the transposed conv, built directly in bf16, shape (N_pad, CK_pad, L_pad).

    patches[n, k*C_in + ci, lo] = x[n, ci, (lo + padding - k*dilation) / stride]
    when that index is a valid integer position in [0, L_in); else 0.
    """
    N, C_in, L_in = x.shape
    lo = jnp.arange(L_out, dtype=jnp.int32)[None, :]        # (1, L_out)
    kk = jnp.arange(K, dtype=jnp.int32)[:, None]            # (K, 1)
    num = lo + padding - kk * dilation                      # (K, L_out)
    valid = (num >= 0) & (num % stride == 0) & (num < L_in * stride)
    li = jnp.where(valid, num // stride, 0)                 # (K, L_out), in-bounds

    xb = x.astype(jnp.bfloat16)
    g = jnp.take(xb, li.reshape(-1), axis=2).reshape(N, C_in, K, L_out)
    g = jnp.where(valid[None, None], g, jnp.bfloat16(0))
    # (N, C_in, K, L_out) -> (N, K, C_in, L_out): minor L_out axis untouched (cheap).
    p = g.transpose(0, 2, 1, 3).reshape(N, K * C_in, L_out)
    return jnp.pad(p, ((0, N_pad - N), (0, CK_pad - K * C_in), (0, L_pad - L_out)))


@functools.partial(jax.jit, static_argnames=("stride", "padding", "output_padding", "dilation"))
def conv_transpose_norm1d(x, weight, bias, gamma, beta,
                          stride=1, padding=0, output_padding=0, dilation=1):
    """x: (N, C_in, L_in); weight: (C_in, C_out, K) -- PyTorch ConvTranspose1d layout.
    Returns (N, C_out, L_out) float32. groups == 1 only.

    `bias` is accepted for API fidelity but intentionally unused: training-mode
    BatchNorm's mean subtraction cancels a per-channel constant bias exactly.
    """
    del bias
    N, C_in, L_in = x.shape
    _, C_out, K = weight.shape
    L_out = (L_in - 1) * stride - 2 * padding + dilation * (K - 1) + output_padding + 1
    CK = K * C_in
    CK_pad = _round_up(CK, 16)               # bf16 (16, 128) sublane-tile alignment

    # ---- tiling: ~_TARGET_COLS output columns per grid step ---------------------
    num_t = max(1, _cdiv(L_out, _TARGET_COLS))          # tiles along L_out
    tile_L = _round_up(_cdiv(L_out, num_t), _LANE)      # lane-aligned tile width
    L_pad = num_t * tile_L
    bn = min(N, max(1, _TARGET_COLS // tile_L))         # batch rows per step (small-L case)
    N_pad = _round_up(N, bn)
    num_b = N_pad // bn
    n_chunks = tile_L // _LANE

    patches = _build_patches(x, K, stride, padding, dilation,
                             L_out, CK_pad, L_pad, N_pad)        # (N_pad, CK_pad, L_pad) bf16
    # w^T[co, k*C_in + ci] = weight[ci, co, k]  (matches the patch row ordering).
    wT = weight.astype(jnp.bfloat16).transpose(1, 2, 0).reshape(C_out, CK)
    wT = jnp.pad(wT, ((0, 0), (0, CK_pad - CK)))

    cparams = pltpu.CompilerParams(
        dimension_semantics=("parallel", "parallel"),   # no cross-tile state: megacore-safe
        vmem_limit_bytes=32 * 1024 * 1024,
    )

    # ---- pass 1: per-block partial statistics -----------------------------------
    stats_kernel = functools.partial(_stats_kernel, c_out=C_out, bn=bn, n_chunks=n_chunks)
    part_sum, part_ssq = pl.pallas_call(
        stats_kernel,
        out_shape=(
            jax.ShapeDtypeStruct((num_b, num_t, C_out, _LANE), jnp.float32),
            jax.ShapeDtypeStruct((num_b, num_t, C_out, _LANE), jnp.float32),
        ),
        grid=(num_b, num_t),
        in_specs=[
            pl.BlockSpec((C_out, CK_pad), lambda b, t: (0, 0)),        # weight^T, resident
            pl.BlockSpec((bn, CK_pad, tile_L), lambda b, t: (b, 0, t)),  # patch tile
        ],
        out_specs=(
            pl.BlockSpec((1, 1, C_out, _LANE), lambda b, t: (b, t, 0, 0)),
            pl.BlockSpec((1, 1, C_out, _LANE), lambda b, t: (b, t, 0, 0)),
        ),
        compiler_params=cparams,
    )(wT, patches)

    # Tiny XLA combine of the partials -> BN affine parameters (f32).
    inv_count = 1.0 / float(N * L_out)
    ch_sum = jnp.sum(part_sum, axis=(0, 1, 3))          # (C_out,)
    ch_ssq = jnp.sum(part_ssq, axis=(0, 1, 3))          # (C_out,)
    mean = ch_sum * inv_count
    var = ch_ssq * inv_count - mean * mean
    scale = gamma.astype(jnp.float32) * lax.rsqrt(var + EPS)
    shift = beta.astype(jnp.float32) - mean * scale

    # ---- pass 2: normalize, writing the final (N, C_out, L_out) layout ----------
    norm_kernel = functools.partial(_normalize_kernel, bn=bn)
    out = pl.pallas_call(
        norm_kernel,
        out_shape=jax.ShapeDtypeStruct((N_pad, C_out, L_pad), jnp.float32),
        grid=(num_b, num_t),
        in_specs=[
            pl.BlockSpec((C_out, CK_pad), lambda b, t: (0, 0)),
            pl.BlockSpec((C_out, 1), lambda b, t: (0, 0)),
            pl.BlockSpec((C_out, 1), lambda b, t: (0, 0)),
            pl.BlockSpec((bn, CK_pad, tile_L), lambda b, t: (b, 0, t)),
        ],
        out_specs=pl.BlockSpec((bn, C_out, tile_L), lambda b, t: (b, 0, t)),
        compiler_params=cparams,
    )(wT, scale.reshape(C_out, 1), shift.reshape(C_out, 1), patches)

    # No-op (elided by XLA) when N % bn == 0 and L_out is a multiple of 128.
    return out[:N, :, :L_out]


def _reference(x, weight, bias, gamma, beta, stride, padding, output_padding, dilation):
    """Pure-JAX reference: ConvTranspose1d via dilated conv, then training-mode BatchNorm1d."""
    C_in, C_out, K = weight.shape
    w_conv = jnp.flip(weight, axis=2).transpose(1, 0, 2)  # (C_out, C_in, K)
    lo_pad = dilation * (K - 1) - padding
    y = lax.conv_general_dilated(
        x, w_conv,
        window_strides=(1,),
        padding=[(lo_pad, lo_pad + output_padding)],
        lhs_dilation=(stride,),
        rhs_dilation=(dilation,),
        dimension_numbers=("NCH", "OIH", "NCH"),
    ) + bias[None, :, None]
    mean = jnp.mean(y, axis=(0, 2), keepdims=True)
    var = jnp.mean(jnp.square(y - mean), axis=(0, 2), keepdims=True)
    return (y - mean) * lax.rsqrt(var + EPS) * gamma[None, :, None] + beta[None, :, None]


if __name__ == "__main__":
    # Module config: ConvTransposeNorm1d(in_channels=4, out_channels=8, kernel_size=3,
    #                                    stride=2, padding=1, output_padding=1)
    N, C_in, L_in = 2, 4, 16
    C_out, K = 8, 3
    stride, padding, output_padding, dilation = 2, 1, 1, 1

    key = jax.random.PRNGKey(0)
    kx, kw, kb = jax.random.split(key, 3)
    x = jax.random.normal(kx, (N, C_in, L_in), dtype=jnp.float32)

    # Deterministic PyTorch-like init: uniform(-bound, bound) for conv params,
    # ones/zeros for BatchNorm affine params.
    fan_in = C_out * K
    bound = 1.0 / np.sqrt(fan_in)
    weight = jax.random.uniform(kw, (C_in, C_out, K), jnp.float32, -bound, bound)
    bias = jax.random.uniform(kb, (C_out,), jnp.float32, -bound, bound)
    gamma = jnp.ones((C_out,), jnp.float32)
    beta = jnp.zeros((C_out,), jnp.float32)

    out = conv_transpose_norm1d(x, weight, bias, gamma, beta,
                                stride=stride, padding=padding,
                                output_padding=output_padding, dilation=dilation)
    out = jax.block_until_ready(out)

    # Reference sees the same bf16-quantized conv operands the kernel uses (the bias
    # is kept in the reference, validating the exact bias/BN-mean cancellation).
    xq = x.astype(jnp.bfloat16).astype(jnp.float32)
    wq = weight.astype(jnp.bfloat16).astype(jnp.float32)
    ref = _reference(xq, wq, bias, gamma, beta,
                     stride, padding, output_padding, dilation)
    np.testing.assert_allclose(np.asarray(out), np.asarray(ref), rtol=1e-3, atol=1e-3)

    print("KERNEL_OK")
</pallas_src>

<mosaic_0001>
module attributes {stable_mosaic.version = 11 : i64} {
  func.func @_stats_kernel(%arg0: i32, %arg1: i32, %arg2: memref<8x16xbf16, #tpu.memory_space<vmem>>, %arg3: memref<2x16x128xbf16, #tpu.memory_space<vmem>>, %arg4: memref<1x1x8x128xf32, #tpu.memory_space<vmem>>, %arg5: memref<1x1x8x128xf32, #tpu.memory_space<vmem>>) attributes {dimension_semantics = [#tpu.dimension_semantics<parallel>, #tpu.dimension_semantics<parallel>], iteration_bounds = array<i64: 1, 1>, scalar_prefetch = 0 : i64, scratch_operands = 0 : i64, tpu.core_type = #tpu.core_type<tc>, window_params = [{pipeline_mode = #tpu.pipeline_mode<synchronous>, transform_indices = @transform_0, window_bounds = array<i64: 8, 16>}, {transform_indices = @transform_1, window_bounds = array<i64: 2, 16, 128>}, {transform_indices = @transform_2, window_bounds = array<i64: 1, 1, 8, 128>}, {transform_indices = @transform_3, window_bounds = array<i64: 1, 1, 8, 128>}]} {
    %c0 = arith.constant 0 : index
    %c0_0 = arith.constant 0 : index
    %0 = vector.load %arg2[%c0, %c0_0] : memref<8x16xbf16, #tpu.memory_space<vmem>>, vector<8x16xbf16>
    %cst = arith.constant 0.000000e+00 : f32
    %1 = vector.broadcast %cst : f32 to vector<8x128xf32>
    %cst_1 = arith.constant 0.000000e+00 : f32
    %2 = vector.broadcast %cst_1 : f32 to vector<8x128xf32>
    %c0_2 = arith.constant 0 : index
    %c0_3 = arith.constant 0 : index
    %c0_4 = arith.constant 0 : index
    %3 = vector.load %arg3[%c0_2, %c0_3, %c0_4] : memref<2x16x128xbf16, #tpu.memory_space<vmem>>, vector<1x16x128xbf16>
    %4 = vector.shape_cast %3 : vector<1x16x128xbf16> to vector<16x128xbf16>
    %cst_5 = arith.constant dense<0.000000e+00> : vector<8x128xf32>
    %5 = tpu.matmul %0, %4, %cst_5 {dimension_numbers = #tpu.dot_dimension_numbers<[1], [0], [0], [1], [0, 0, 1, 1], [], []>} : vector<8x16xbf16>, vector<16x128xbf16>, vector<8x128xf32> -> vector<8x128xf32>
    %6 = arith.addf %1, %5 : vector<8x128xf32>
    %7 = arith.mulf %5, %5 : vector<8x128xf32>
    %8 = arith.addf %2, %7 : vector<8x128xf32>
    %c1 = arith.constant 1 : index
    %c0_6 = arith.constant 0 : index
    %c0_7 = arith.constant 0 : index
    %9 = vector.load %arg3[%c1, %c0_6, %c0_7] : memref<2x16x128xbf16, #tpu.memory_space<vmem>>, vector<1x16x128xbf16>
    %10 = vector.shape_cast %9 : vector<1x16x128xbf16> to vector<16x128xbf16>
    %cst_8 = arith.constant dense<0.000000e+00> : vector<8x128xf32>
    %11 = tpu.matmul %0, %10, %cst_8 {dimension_numbers = #tpu.dot_dimension_numbers<[1], [0], [0], [1], [0, 0, 1, 1], [], []>} : vector<8x16xbf16>, vector<16x128xbf16>, vector<8x128xf32> -> vector<8x128xf32>
    %12 = arith.addf %6, %11 : vector<8x128xf32>
    %13 = arith.mulf %11, %11 : vector<8x128xf32>
    %14 = arith.addf %8, %13 : vector<8x128xf32>
    %c0_9 = arith.constant 0 : index
    %c0_10 = arith.constant 0 : index
    %c0_11 = arith.constant 0 : index
    %c0_12 = arith.constant 0 : index
    %15 = vector.load %arg4[%c0_9, %c0_10, %c0_11, %c0_12] : memref<1x1x8x128xf32, #tpu.memory_space<vmem>>, vector<1x1x8x128xf32>
    %16 = vector.shape_cast %15 : vector<1x1x8x128xf32> to vector<8x128xf32>
    %17 = vector.shape_cast %12 : vector<8x128xf32> to vector<1x1x8x128xf32>
    tpu.vector_store %arg4[%c0_9, %c0_10, %c0_11, %c0_12], %17 {strides = array<i32>} : memref<1x1x8x128xf32, #tpu.memory_space<vmem>>, vector<1x1x8x128xf32>,
    %c0_13 = arith.constant 0 : index
    %c0_14 = arith.constant 0 : index
    %c0_15 = arith.constant 0 : index
    %c0_16 = arith.constant 0 : index
    %18 = vector.load %arg5[%c0_13, %c0_14, %c0_15, %c0_16] : memref<1x1x8x128xf32, #tpu.memory_space<vmem>>, vector<1x1x8x128xf32>
    %19 = vector.shape_cast %18 : vector<1x1x8x128xf32> to vector<8x128xf32>
    %20 = vector.shape_cast %14 : vector<8x128xf32> to vector<1x1x8x128xf32>
    tpu.vector_store %arg5[%c0_13, %c0_14, %c0_15, %c0_16], %20 {strides = array<i32>} : memref<1x1x8x128xf32, #tpu.memory_space<vmem>>, vector<1x1x8x128xf32>,
    return
  }
  func.func @transform_0(%arg0: i32, %arg1: i32) -> (i32, i32) {
    %c0_i32 = arith.constant 0 : i32
    %c0_i32_0 = arith.constant 0 : i32
    %c0_i32_1 = arith.constant 0 : i32
    return %c0_i32, %c0_i32_0 : i32, i32
  }
  func.func @transform_1(%arg0: i32, %arg1: i32) -> (i32, i32, i32) {
    %c0_i32 = arith.constant 0 : i32
    %c0_i32_0 = arith.constant 0 : i32
    return %arg0, %c0_i32, %arg1 : i32, i32, i32
  }
  func.func @transform_2(%arg0: i32, %arg1: i32) -> (i32, i32, i32, i32) {
    %c0_i32 = arith.constant 0 : i32
    %c0_i32_0 = arith.constant 0 : i32
    %c0_i32_1 = arith.constant 0 : i32
    return %arg0, %arg1, %c0_i32, %c0_i32_0 : i32, i32, i32, i32
  }
  func.func @transform_3(%arg0: i32, %arg1: i32) -> (i32, i32, i32, i32) {
    %c0_i32 = arith.constant 0 : i32
    %c0_i32_0 = arith.constant 0 : i32
    %c0_i32_1 = arith.constant 0 : i32
    return %arg0, %arg1, %c0_i32, %c0_i32_0 : i32, i32, i32, i32
  }
}

module attributes {stable_mosaic.version = 11 : i64} {
  func.func @_normalize_kernel(%arg0: i32, %arg1: i32, %arg2: memref<8x16xbf16, #tpu.memory_space<vmem>>, %arg3: memref<8x1xf32, #tpu.memory_space<vmem>>, %arg4: memref<8x1xf32, #tpu.memory_space<vmem>>, %arg5: memref<2x16x128xbf16, #tpu.memory_space<vmem>>, %arg6: memref<2x8x128xf32, #tpu.memory_space<vmem>>) attributes {dimension_semantics = [#tpu.dimension_semantics<parallel>, #tpu.dimension_semantics<parallel>], iteration_bounds = array<i64: 1, 1>, scalar_prefetch = 0 : i64, scratch_operands = 0 : i64, tpu.core_type = #tpu.core_type<tc>, window_params = [{pipeline_mode = #tpu.pipeline_mode<synchronous>, transform_indices = @transform_0, window_bounds = array<i64: 8, 16>}, {pipeline_mode = #tpu.pipeline_mode<synchronous>, transform_indices = @transform_1, window_bounds = array<i64: 8, 1>}, {pipeline_mode = #tpu.pipeline_mode<synchronous>, transform_indices = @transform_2, window_bounds = array<i64: 8, 1>}, {transform_indices = @transform_3, window_bounds = array<i64: 2, 16, 128>}, {transform_indices = @transform_4, window_bounds = array<i64: 2, 8, 128>}]} {
    %c0 = arith.constant 0 : index
    %c0_0 = arith.constant 0 : index
    %0 = vector.load %arg2[%c0, %c0_0] : memref<8x16xbf16, #tpu.memory_space<vmem>>, vector<8x16xbf16>
    %c0_1 = arith.constant 0 : index
    %c0_2 = arith.constant 0 : index
    %1 = vector.load %arg3[%c0_1, %c0_2] : memref<8x1xf32, #tpu.memory_space<vmem>>, vector<8x1xf32>
    %c0_3 = arith.constant 0 : index
    %c0_4 = arith.constant 0 : index
    %2 = vector.load %arg4[%c0_3, %c0_4] : memref<8x1xf32, #tpu.memory_space<vmem>>, vector<8x1xf32>
    %c0_5 = arith.constant 0 : index
    %c0_6 = arith.constant 0 : index
    %c0_7 = arith.constant 0 : index
    %3 = vector.load %arg5[%c0_5, %c0_6, %c0_7] : memref<2x16x128xbf16, #tpu.memory_space<vmem>>, vector<1x16x128xbf16>
    %4 = vector.shape_cast %3 : vector<1x16x128xbf16> to vector<16x128xbf16>
    %cst = arith.constant dense<0.000000e+00> : vector<8x128xf32>
    %5 = tpu.matmul %0, %4, %cst {dimension_numbers = #tpu.dot_dimension_numbers<[1], [0], [0], [1], [0, 0, 1, 1], [], []>} : vector<8x16xbf16>, vector<16x128xbf16>, vector<8x128xf32> -> vector<8x128xf32>
    %6 = vector.broadcast %1 : vector<8x1xf32> to vector<8x128xf32>
    %7 = arith.mulf %5, %6 : vector<8x128xf32>
    %8 = vector.broadcast %2 : vector<8x1xf32> to vector<8x128xf32>
    %9 = arith.addf %7, %8 : vector<8x128xf32>
    %c0_8 = arith.constant 0 : index
    %c0_9 = arith.constant 0 : index
    %c0_10 = arith.constant 0 : index
    %10 = vector.load %arg6[%c0_8, %c0_9, %c0_10] : memref<2x8x128xf32, #tpu.memory_space<vmem>>, vector<1x8x128xf32>
    %11 = vector.shape_cast %10 : vector<1x8x128xf32> to vector<8x128xf32>
    %12 = vector.shape_cast %9 : vector<8x128xf32> to vector<1x8x128xf32>
    tpu.vector_store %arg6[%c0_8, %c0_9, %c0_10], %12 {strides = array<i32>} : memref<2x8x128xf32, #tpu.memory_space<vmem>>, vector<1x8x128xf32>,
    %c1 = arith.constant 1 : index
    %c0_11 = arith.constant 0 : index
    %c0_12 = arith.constant 0 : index
    %13 = vector.load %arg5[%c1, %c0_11, %c0_12] : memref<2x16x128xbf16, #tpu.memory_space<vmem>>, vector<1x16x128xbf16>
    %14 = vector.shape_cast %13 : vector<1x16x128xbf16> to vector<16x128xbf16>
    %cst_13 = arith.constant dense<0.000000e+00> : vector<8x128xf32>
    %15 = tpu.matmul %0, %14, %cst_13 {dimension_numbers = #tpu.dot_dimension_numbers<[1], [0], [0], [1], [0, 0, 1, 1], [], []>} : vector<8x16xbf16>, vector<16x128xbf16>, vector<8x128xf32> -> vector<8x128xf32>
    %16 = vector.broadcast %1 : vector<8x1xf32> to vector<8x128xf32>
    %17 = arith.mulf %15, %16 : vector<8x128xf32>
    %18 = vector.broadcast %2 : vector<8x1xf32> to vector<8x128xf32>
    %19 = arith.addf %17, %18 : vector<8x128xf32>
    %c1_14 = arith.constant 1 : index
    %c0_15 = arith.constant 0 : index
    %c0_16 = arith.constant 0 : index
    %20 = vector.load %arg6[%c1_14, %c0_15, %c0_16] : memref<2x8x128xf32, #tpu.memory_space<vmem>>, vector<1x8x128xf32>
    %21 = vector.shape_cast %20 : vector<1x8x128xf32> to vector<8x128xf32>
    %22 = vector.shape_cast %19 : vector<8x128xf32> to vector<1x8x128xf32>
    tpu.vector_store %arg6[%c1_14, %c0_15, %c0_16], %22 {strides = array<i32>} : memref<2x8x128xf32, #tpu.memory_space<vmem>>, vector<1x8x128xf32>,
    return
  }
  func.func @transform_0(%arg0: i32, %arg1: i32) -> (i32, i32) {
    %c0_i32 = arith.constant 0 : i32
    %c0_i32_0 = arith.constant 0 : i32
    %c0_i32_1 = arith.constant 0 : i32
    return %c0_i32, %c0_i32_0 : i32, i32
  }
  func.func @transform_1(%arg0: i32, %arg1: i32) -> (i32, i32) {
    %c0_i32 = arith.constant 0 : i32
    %c0_i32_0 = arith.constant 0 : i32
    %c0_i32_1 = arith.constant 0 : i32
    return %c0_i32, %c0_i32_0 : i32, i32
  }
  func.func @transform_2(%arg0: i32, %arg1: i32) -> (i32, i32) {
    %c0_i32 = arith.constant 0 : i32
    %c0_i32_0 = arith.constant 0 : i32
    %c0_i32_1 = arith.constant 0 : i32
    return %c0_i32, %c0_i32_0 : i32, i32
  }
  func.func @transform_3(%arg0: i32, %arg1: i32) -> (i32, i32, i32) {
    %c0_i32 = arith.constant 0 : i32
    %c0_i32_0 = arith.constant 0 : i32
    return %arg0, %c0_i32, %arg1 : i32, i32, i32
  }
  func.func @transform_4(%arg0: i32, %arg1: i32) -> (i32, i32, i32) {
    %c0_i32 = arith.constant 0 : i32
    %c0_i32_0 = arith.constant 0 : i32
    return %arg0, %c0_i32, %arg1 : i32, i32, i32
  }
}

</mosaic_0001>

<llo_original>
// kernel: conv_transpose_norm1d.2
$region0: #{conv_transpose_norm1d.2}
  #allocation0 [shape = 'u32[]', space=smem, size = 0x4, offset = 0x4, fixed_abs, tag = 'smem constant byte address 0x4 - core index']
  #allocation1 [shape = 'u32[144,128]{1,0:T(1,128)}', space=vmem, size = 0x12000, scoped, tag = 'internal scratch']
  %s0 = inlined_call_operand.vmem [shape: bf16[8,16], index: 0, kind: input, shape index: {}]
  %s1 = inlined_call_operand.vmem [shape: bf16[2,16,128], index: 1, kind: input, shape index: {}]
  %s2 = inlined_call_operand.vmem [shape: f32[1,1,8,128], index: 2, kind: output, shape index: {0}]
  %s3 = inlined_call_operand.vmem [shape: f32[1,1,8,128], index: 3, kind: output, shape index: {1}]
  %4 = xla_tuple %s2, %s3
  %s5 = sld [smem:[#allocation0]]
  $region26: #{conv_transpose_norm1d.2} parent=0
    _
  %s7 = ssub.s32 1, %s5
  %s8 = scalar_select 0, %s7, %s5
  // Predicated region
  $region2: #{conv_transpose_norm1d.2} parent=0 // pred_check
    _
  $region3: #{conv_transpose_norm1d.2} parent=0 // pred_check_branch
    %10 = sbr.rel (0) target = $region5
  $region4: #{conv_transpose_norm1d.2} parent=0 // pred_region
    _
  $region5: #{conv_transpose_norm1d.2} parent=0 // pred_fallthru
    _
  // Predicated region
  $region6: #{conv_transpose_norm1d.2} parent=0 // pred_check
    _
  $region7: #{conv_transpose_norm1d.2} parent=0 // pred_check_branch
    %12 = sbr.rel (0) target = $region9
  $region8: #{conv_transpose_norm1d.2} parent=0 // pred_region
    _
  $region9: #{conv_transpose_norm1d.2} parent=0 // pred_fallthru
    _
  %v14 = vld [vmem:[%s0] sm:$0xf]
  %v15 = vld [vmem:[%s1] sm:$0xf]
  %v16 = vld [vmem:[%s1 + $0x4] sm:$0xf]
  %v19 = vunpack.c.l.b16 %v15
  %v20 = vunpack.c.l.b16 %v16
  %v21 = vpack.c.b16 %v20, %v19
  %vm23 = vcmask 130048
  %v25 = vsel %vm23, %v14, 0
  %27 = vmatprep.subr.bf16.mxu0 0
  %28 = vmatpush1.bf16.msra.mxu0 %v21
  %29 = vmatprep.subr.bf16.mxu0 0
  %30 = vmatpush1.bf16.msra.mxu0 0
  %31 = vmatprep.subr.bf16.mxu0 0
  %32 = vmatpush1.bf16.msra.mxu0 0
  %33 = vmatprep.subr.bf16.mxu0 0
  %34 = vmatpush1.bf16.msra.mxu0 0
  %35 = vmatprep.subr.bf16.mxu0 0
  %36 = vmatpush1.bf16.msra.mxu0 0
  %37 = vmatprep.subr.bf16.mxu0 0
  %38 = vmatpush1.bf16.msra.mxu0 0
  %39 = vmatprep.subr.bf16.mxu0 0
  %40 = vmatpush1.bf16.msra.mxu0 0
  %41 = vmatprep.subr.bf16.mxu0 0
  %42 = vmatpush1.bf16.msra.mxu0 0
  %43 = vmatprep.subr.bf16.mxu0 0
  %44 = vmatpush1.bf16.msra.mxu0 0
  %45 = vmatprep.subr.bf16.mxu0 0
  %46 = vmatpush1.bf16.msra.mxu0 0
  %47 = vmatprep.subr.bf16.mxu0 0
  %48 = vmatpush1.bf16.msra.mxu0 0
  %49 = vmatprep.subr.bf16.mxu0 0
  %50 = vmatpush1.bf16.msra.mxu0 0
  %51 = vmatprep.subr.bf16.mxu0 0
  %52 = vmatpush1.bf16.msra.mxu0 0
  %53 = vmatprep.subr.bf16.mxu0 0
  %54 = vmatpush1.bf16.msra.mxu0 0
  %55 = vmatprep.subr.bf16.mxu0 0
  %56 = vmatpush1.bf16.msra.mxu0 0
  %57 = vmatprep.subr.bf16.mxu0 0
  %58 = vmatpush1.bf16.msra.mxu0 0
  %59 = vmatprep.mubr.bf16.mxu0 0
  %60 = vmatmul.mubr.bf16.gmra.mrb[0].mxu0 %v25
  %v61 = vpop.f32.mrb[0].mxu0
  %v62 = vadd.f32 0.0, %v61
  %v63 = vpop.f32.mrb[0].mxu0
  %v64 = vpop.f32.mrb[0].mxu0
  %v65 = vpop.f32.mrb[0].mxu0
  %66 = vdwg.mxu0
  %v67 = vadd.f32 %v62, 0.0
  %v68 = vmul.f32 %v62, %v62
  %v69 = vadd.f32 %v68, 0.0
  %s70 = scalar_lea.vmem %s1, 8
  %v71 = vld [vmem:[%s70] sm:$0xf]
  %v72 = vld [vmem:[%s70 + $0x4] sm:$0xf]
  %v75 = vunpack.c.l.b16 %v71
  %v76 = vunpack.c.l.b16 %v72
  %v77 = vpack.c.b16 %v76, %v75
  %79 = vmatprep.subr.bf16.mxu0 0
  %80 = vmatpush1.bf16.msra.mxu0 %v77
  %81 = vmatprep.subr.bf16.mxu0 0
  %82 = vmatpush1.bf16.msra.mxu0 0
  %83 = vmatprep.subr.bf16.mxu0 0
  %84 = vmatpush1.bf16.msra.mxu0 0
  %85 = vmatprep.subr.bf16.mxu0 0
  %86 = vmatpush1.bf16.msra.mxu0 0
  %87 = vmatprep.subr.bf16.mxu0 0
  %88 = vmatpush1.bf16.msra.mxu0 0
  %89 = vmatprep.subr.bf16.mxu0 0
  %90 = vmatpush1.bf16.msra.mxu0 0
  %91 = vmatprep.subr.bf16.mxu0 0
  %92 = vmatpush1.bf16.msra.mxu0 0
  %93 = vmatprep.subr.bf16.mxu0 0
  %94 = vmatpush1.bf16.msra.mxu0 0
  %95 = vmatprep.subr.bf16.mxu0 0
  %96 = vmatpush1.bf16.msra.mxu0 0
  %97 = vmatprep.subr.bf16.mxu0 0
  %98 = vmatpush1.bf16.msra.mxu0 0
  %99 = vmatprep.subr.bf16.mxu0 0
  %100 = vmatpush1.bf16.msra.mxu0 0
  %101 = vmatprep.subr.bf16.mxu0 0
  %102 = vmatpush1.bf16.msra.mxu0 0
  %103 = vmatprep.subr.bf16.mxu0 0
  %104 = vmatpush1.bf16.msra.mxu0 0
  %105 = vmatprep.subr.bf16.mxu0 0
  %106 = vmatpush1.bf16.msra.mxu0 0
  %107 = vmatprep.subr.bf16.mxu0 0
  %108 = vmatpush1.bf16.msra.mxu0 0
  %109 = vmatprep.subr.bf16.mxu0 0
  %110 = vmatpush1.bf16.msra.mxu0 0
  %111 = vmatprep.mubr.bf16.mxu0 0
  %112 = vmatmul.mubr.bf16.gmra.mrb[0].mxu0 %v25
  %v113 = vpop.f32.mrb[0].mxu0
  %v114 = vadd.f32 0.0, %v113
  %v115 = vpop.f32.mrb[0].mxu0
  %v116 = vpop.f32.mrb[0].mxu0
  %v117 = vpop.f32.mrb[0].mxu0
  %118 = vdwg.mxu0
  %v119 = vadd.f32 %v67, %v114
  %v120 = vmul.f32 %v114, %v114
  %v121 = vadd.f32 %v69, %v120
  %122 = vst [vmem:[%s2] sm:$0xff] %v119
  %123 = vst [vmem:[%s3] sm:$0xff] %v121
  // Predicated region
  $region10: #{conv_transpose_norm1d.2} parent=0 // pred_check
    _
  $region11: #{conv_transpose_norm1d.2} parent=0 // pred_check_branch
    %125 = sbr.rel (0) target = $region13
  $region12: #{conv_transpose_norm1d.2} parent=0 // pred_region
    _
  $region13: #{conv_transpose_norm1d.2} parent=0 // pred_fallthru
    _
  // Predicated region
  $region14: #{conv_transpose_norm1d.2} parent=0 // pred_check
    _
  $region15: #{conv_transpose_norm1d.2} parent=0 // pred_check_branch
    %127 = sbr.rel (0) target = $region17
  $region16: #{conv_transpose_norm1d.2} parent=0 // pred_region
    _
  $region17: #{conv_transpose_norm1d.2} parent=0 // pred_fallthru
    _
  // Predicated region
  $region18: #{conv_transpose_norm1d.2} parent=0 // pred_check
    _
  $region19: #{conv_transpose_norm1d.2} parent=0 // pred_check_branch
    %129 = sbr.rel (0) target = $region21
  $region20: #{conv_transpose_norm1d.2} parent=0 // pred_region
    _
  $region21: #{conv_transpose_norm1d.2} parent=0 // pred_fallthru
    _
  // Predicated region
  $region22: #{conv_transpose_norm1d.2} parent=0 // pred_check
    _
  $region23: #{conv_transpose_norm1d.2} parent=0 // pred_check_branch
    %131 = sbr.rel (0) target = $region25
  $region24: #{conv_transpose_norm1d.2} parent=0 // pred_region
    _
  $region25: #{conv_transpose_norm1d.2} parent=0 // pred_fallthru
    _

// kernel: conv_transpose_norm1d.3
$region0: #{conv_transpose_norm1d.3}
  #allocation0 [shape = 'u32[]', space=smem, size = 0x4, offset = 0x4, fixed_abs, tag = 'smem constant byte address 0x4 - core index']
  #allocation1 [shape = 'u32[144,128]{1,0:T(1,128)}', space=vmem, size = 0x12000, scoped, tag = 'internal scratch']
  %s0 = inlined_call_operand.vmem [shape: bf16[8,16], index: 0, kind: input, shape index: {}]
  %s1 = inlined_call_operand.vmem [shape: f32[8,1], index: 1, kind: input, shape index: {}]
  %s2 = inlined_call_operand.vmem [shape: f32[8,1], index: 2, kind: input, shape index: {}]
  %s3 = inlined_call_operand.vmem [shape: bf16[2,16,128], index: 3, kind: input, shape index: {}]
  %s4 = inlined_call_operand.hbm [shape: f32[2,8,128], index: 4, kind: output, shape index: {}]
  %s5 = sld [smem:[#allocation0]]
  $region26: #{conv_transpose_norm1d.3} parent=0
    _
  %s7 = ssub.s32 1, %s5
  %s8 = scalar_select 0, %s7, %s5
  $region1: #{conv_transpose_norm1d.3} parent=0
    #allocation2 [shape = 'u8[8192]{0}', space=vmem, size = 0x2000, scoped, tag = 'output window, operand 0, single buffered']
    #allocation3 [shape = 's32[1]{0}', space=sflag, size = 0x4, scoped, tag = 'scoped memory for conv_transpose_norm1d.3']
    %9 = vsyncpa [#allocation3], 0
    // Predicated region
    $region2: #{conv_transpose_norm1d.3} parent=1 // pred_check
      _
    $region3: #{conv_transpose_norm1d.3} parent=1 // pred_check_branch
      %11 = sbr.rel (0) target = $region5
    $region4: #{conv_transpose_norm1d.3} parent=1 // pred_region
      _
    $region5: #{conv_transpose_norm1d.3} parent=1 // pred_fallthru
      _
    // Predicated region
    $region6: #{conv_transpose_norm1d.3} parent=1 // pred_check
      _
    $region7: #{conv_transpose_norm1d.3} parent=1 // pred_check_branch
      %13 = sbr.rel (0) target = $region9
    $region8: #{conv_transpose_norm1d.3} parent=1 // pred_region
      _
    $region9: #{conv_transpose_norm1d.3} parent=1 // pred_fallthru
      _
    // Predicated region
    $region10: #{conv_transpose_norm1d.3} parent=1 // pred_check
      _
    $region11: #{conv_transpose_norm1d.3} parent=1 // pred_check_branch
      %15 = sbr.rel (0) target = $region13
    $region12: #{conv_transpose_norm1d.3} parent=1 // pred_region
      _
    $region13: #{conv_transpose_norm1d.3} parent=1 // pred_fallthru
      _
    // Predicated region
    $region14: #{conv_transpose_norm1d.3} parent=1 // pred_check
      _
    $region15: #{conv_transpose_norm1d.3} parent=1 // pred_check_branch
      %17 = sbr.rel (0) target = $region17
    $region16: #{conv_transpose_norm1d.3} parent=1 // pred_region
      _
    $region17: #{conv_transpose_norm1d.3} parent=1 // pred_fallthru
      _
    %v19 = vld [vmem:[%s0] sm:$0xf]
    %v20 = vld [vmem:[%s1] sm:$0xff]
    %v21 = vld [vmem:[%s2] sm:$0xff]
    %v22 = vld [vmem:[%s3] sm:$0xf]
    %v23 = vld [vmem:[%s3 + $0x4] sm:$0xf]
    %v26 = vunpack.c.l.b16 %v22
    %v27 = vunpack.c.l.b16 %v23
    %v28 = vpack.c.b16 %v27, %v26
    %vm30 = vcmask 130048
    %v32 = vsel %vm30, %v19, 0
    %34 = vmatprep.subr.bf16.mxu0 0
    %35 = vmatpush1.bf16.msra.mxu0 %v28
    %36 = vmatprep.subr.bf16.mxu0 0
    %37 = vmatpush1.bf16.msra.mxu0 0
    %38 = vmatprep.subr.bf16.mxu0 0
    %39 = vmatpush1.bf16.msra.mxu0 0
    %40 = vmatprep.subr.bf16.mxu0 0
    %41 = vmatpush1.bf16.msra.mxu0 0
    %42 = vmatprep.subr.bf16.mxu0 0
    %43 = vmatpush1.bf16.msra.mxu0 0
    %44 = vmatprep.subr.bf16.mxu0 0
    %45 = vmatpush1.bf16.msra.mxu0 0
    %46 = vmatprep.subr.bf16.mxu0 0
    %47 = vmatpush1.bf16.msra.mxu0 0
    %48 = vmatprep.subr.bf16.mxu0 0
    %49 = vmatpush1.bf16.msra.mxu0 0
    %50 = vmatprep.subr.bf16.mxu0 0
    %51 = vmatpush1.bf16.msra.mxu0 0
    %52 = vmatprep.subr.bf16.mxu0 0
    %53 = vmatpush1.bf16.msra.mxu0 0
    %54 = vmatprep.subr.bf16.mxu0 0
    %55 = vmatpush1.bf16.msra.mxu0 0
    %56 = vmatprep.subr.bf16.mxu0 0
    %57 = vmatpush1.bf16.msra.mxu0 0
    %58 = vmatprep.subr.bf16.mxu0 0
    %59 = vmatpush1.bf16.msra.mxu0 0
    %60 = vmatprep.subr.bf16.mxu0 0
    %61 = vmatpush1.bf16.msra.mxu0 0
    %62 = vmatprep.subr.bf16.mxu0 0
    %63 = vmatpush1.bf16.msra.mxu0 0
    %64 = vmatprep.subr.bf16.mxu0 0
    %65 = vmatpush1.bf16.msra.mxu0 0
    %66 = vmatprep.mubr.bf16.mxu0 0
    %67 = vmatmul.mubr.bf16.gmra.mrb[0].mxu0 %v32
    %v68 = vpop.f32.mrb[0].mxu0
    %v69 = vadd.f32 0.0, %v68
    %v70 = vpop.f32.mrb[0].mxu0
    %v71 = vpop.f32.mrb[0].mxu0
    %v72 = vpop.f32.mrb[0].mxu0
    %73 = vdwg.mxu0
    %75 = vset.pattern.permute.xlu0 0
    %76 = vperm.xlu0 %75, %v20
    %v77 = vpop.permute.xlu0 %76
    %v79 = vmul.f32 %v69, %v77
    %81 = vset.pattern.permute.xlu0 0
    %82 = vperm.xlu0 %81, %v21
    %v83 = vpop.permute.xlu0 %82
    %v85 = vadd.f32 %v79, %v83
    %86 = vst [vmem:[#allocation2] sm:$0xff] %v85
    %s87 = scalar_lea.vmem %s3, 8
    %v88 = vld [vmem:[%s87] sm:$0xf]
    %v89 = vld [vmem:[%s87 + $0x4] sm:$0xf]
    %v92 = vunpack.c.l.b16 %v88
    %v93 = vunpack.c.l.b16 %v89
    %v94 = vpack.c.b16 %v93, %v92
    %96 = vmatprep.subr.bf16.mxu0 0
    %97 = vmatpush1.bf16.msra.mxu0 %v94
    %98 = vmatprep.subr.bf16.mxu0 0
    %99 = vmatpush1.bf16.msra.mxu0 0
    %100 = vmatprep.subr.bf16.mxu0 0
    %101 = vmatpush1.bf16.msra.mxu0 0
    %102 = vmatprep.subr.bf16.mxu0 0
    %103 = vmatpush1.bf16.msra.mxu0 0
    %104 = vmatprep.subr.bf16.mxu0 0
    %105 = vmatpush1.bf16.msra.mxu0 0
    %106 = vmatprep.subr.bf16.mxu0 0
    %107 = vmatpush1.bf16.msra.mxu0 0
    %108 = vmatprep.subr.bf16.mxu0 0
    %109 = vmatpush1.bf16.msra.mxu0 0
    %110 = vmatprep.subr.bf16.mxu0 0
    %111 = vmatpush1.bf16.msra.mxu0 0
    %112 = vmatprep.subr.bf16.mxu0 0
    %113 = vmatpush1.bf16.msra.mxu0 0
    %114 = vmatprep.subr.bf16.mxu0 0
    %115 = vmatpush1.bf16.msra.mxu0 0
    %116 = vmatprep.subr.bf16.mxu0 0
    %117 = vmatpush1.bf16.msra.mxu0 0
    %118 = vmatprep.subr.bf16.mxu0 0
    %119 = vmatpush1.bf16.msra.mxu0 0
    %120 = vmatprep.subr.bf16.mxu0 0
    %121 = vmatpush1.bf16.msra.mxu0 0
    %122 = vmatprep.subr.bf16.mxu0 0
    %123 = vmatpush1.bf16.msra.mxu0 0
    %124 = vmatprep.subr.bf16.mxu0 0
    %125 = vmatpush1.bf16.msra.mxu0 0
    %126 = vmatprep.subr.bf16.mxu0 0
    %127 = vmatpush1.bf16.msra.mxu0 0
    %128 = vmatprep.mubr.bf16.mxu0 0
    %129 = vmatmul.mubr.bf16.gmra.mrb[0].mxu0 %v32
    %v130 = vpop.f32.mrb[0].mxu0
    %v131 = vadd.f32 0.0, %v130
    %v132 = vpop.f32.mrb[0].mxu0
    %v133 = vpop.f32.mrb[0].mxu0
    %v134 = vpop.f32.mrb[0].mxu0
    %135 = vdwg.mxu0
    %v136 = vmul.f32 %v131, %v77
    %v137 = vadd.f32 %v136, %v83
    %s138 = scalar_lea.vmem [#allocation2], 8
    %139 = vst [vmem:[%s138] sm:$0xff] %v137
    // Predicated region
    $region18: #{conv_transpose_norm1d.3} parent=1 // pred_check
      _
    $region19: #{conv_transpose_norm1d.3} parent=1 // pred_check_branch
      %141 = sbr.rel (0) target = $region21
    $region20: #{conv_transpose_norm1d.3} parent=1 // pred_region
      %s143 = ssub.s32 256, 256
      %144 = vsyncadd [#allocation3], %s143
      %s145 = sshll.u32 [#allocation2], 4
      %s146 = int_to_ptr.vmem [resolvable:$true] %s145
      %151 = dma.vmem_to_hbm [thread:$0]  %s146, 256, %s4, [#allocation3], 128, 128, 8
    $region21: #{conv_transpose_norm1d.3} parent=1 // pred_fallthru
      _
    // Predicated region
    $region22: #{conv_transpose_norm1d.3} parent=1 // pred_check
      _
    $region23: #{conv_transpose_norm1d.3} parent=1 // pred_check_branch
      %153 = sbr.rel (0) target = $region25
    $region24: #{conv_transpose_norm1d.3} parent=1 // pred_region
      %154 = dma.done [#allocation3], 256
    $region25: #{conv_transpose_norm1d.3} parent=1 // pred_fallthru
      _
    %155 = vsyncpa [#allocation3], 1

</llo_original>
